<compile_context>
chip_gen: v7x
topology: tpu7x:2x2x1
jax: 0.10.0
libtpu: 0.0.40
codegen_flags: <defaults>
</compile_context>

<pallas_src>
import functools

import jax
import jax.numpy as jnp
from jax.experimental import pallas as pl
from jax.experimental.pallas import tpu as pltpu


def _round_up(x: int, m: int) -> int:
    return ((x + m - 1) // m) * m


def _slab_width(state_dim: int, action_dim: int, hidden_dim: int) -> int:
    """Shared lane width C (multiple of 128) for input slab, intermediates, weight
    slab and output slab, so every load/store is lane-dense."""
    S, A, H = state_dim, action_dim, hidden_dim
    H2 = H // 2
    need = max(
        2 * S + A,      # input slab  [state | action | eps]
        2 * H + H2,     # stage-1 width [h_t | h_r | h_u]
        H + 2 * H2,     # stage-2 width [h2_t | h2_r | h_u pass-through]
        2 * S + 2,      # stage-3 width [mean | logvar | reward | unc]
    )
    return _round_up(max(need, 1), 128)


# ----------------------------------------------------------------------------- kernel
def _env_model_kernel(x_ref, w_ref, b_ref, out_ref, *, S: int, A: int):
    """One batch tile.
    x_ref:   (bb, C)  = [state | action | eps | 0]
    w_ref:   (3, C, C) packed block-diagonal weights
    b_ref:   (3, C)    packed biases
    out_ref: (bb, C)  = [next_state | reward | uncertainty | 0]
    """
    C = x_ref.shape[-1]
    eps_off = S + A

    x = x_ref[...]                       # lane-dense input slab
    b1 = b_ref[0:1, :]
    b2 = b_ref[1:2, :]
    b3 = b_ref[2:3, :]

    # Stage 1: fused first layers of transition / reward / uncertainty branches.
    # eps lanes and pad lanes of x hit all-zero weight rows, so they contribute nothing.
    h1 = jnp.maximum(jnp.dot(x, w_ref[0], preferred_element_type=jnp.float32) + b1, 0.0)
    # Stage 2: block-diagonal second layers (transition H->H, reward H->H/2) plus an
    # identity block carrying the uncertainty hidden straight through (exact: h_u >= 0).
    h2 = jnp.maximum(jnp.dot(h1, w_ref[1], preferred_element_type=jnp.float32) + b2, 0.0)
    # Stage 3: block-diagonal heads -> [mean(S) | logvar(S) | reward(1) | unc_logit(1) | 0].
    y3 = jnp.dot(h2, w_ref[2], preferred_element_type=jnp.float32) + b3

    mean = y3[:, 0:S]
    logvar = y3[:, S:2 * S]              # not clamped; matches the PyTorch reference
    eps = x[:, eps_off:eps_off + S]
    next_state = mean + jnp.exp(0.5 * logvar) * eps
    reward = y3[:, 2 * S:2 * S + 1]
    unc_logit = y3[:, 2 * S + 1:2 * S + 2]
    unc = 1.0 / (1.0 + jnp.exp(-unc_logit))          # sigmoid

    pad = jnp.zeros((x.shape[0], C - (S + 2)), jnp.float32)
    out_ref[...] = jnp.concatenate([next_state, reward, unc, pad], axis=-1)


# ----------------------------------------------------------------------------- wrapper
def environment_model_forward(state, action, packed, eps, *, hidden_dim, block_b=2048):
    """state: (B,S) f32, action: (B,A) f32, eps: (B,S) f32 standard-normal noise
    (the torch.randn_like equivalent, passed in explicitly for reproducibility)."""
    B, S = state.shape
    A = action.shape[-1]
    H = hidden_dim
    C = _slab_width(S, A, H)

    # Tie the packed parameters to the kernel's lane offsets (correctness review item).
    assert H % 2 == 0, "hidden_dim must be even"
    assert packed["w"].shape == (3, C, C) and packed["b"].shape == (3, C), (
        "packed params do not match (state_dim, action_dim, hidden_dim)")

    # ONE lane-dense input slab: [state | action | eps | zero-pad] (single DMA per tile).
    x_slab = jnp.concatenate(
        [state, action, eps, jnp.zeros((B, C - (2 * S + A)), jnp.float32)], axis=-1)

    # Batch tiling: aim for >= 2 grid steps so ("parallel",) can shard across both
    # v7x TensorCores; tiles are multiples of 8 sublanes, capped at block_b rows.
    bb = min(block_b, max(8, _round_up((B + 1) // 2, 8)))
    Bp = _round_up(B, bb)
    if Bp != B:
        x_slab = jnp.pad(x_slab, ((0, Bp - B), (0, 0)))

    out = pl.pallas_call(
        functools.partial(_env_model_kernel, S=S, A=A),
        out_shape=jax.ShapeDtypeStruct((Bp, C), jnp.float32),
        grid=(Bp // bb,),
        in_specs=[
            pl.BlockSpec((bb, C), lambda i: (i, 0)),        # fused input slab
            pl.BlockSpec((3, C, C), lambda i: (0, 0, 0)),   # weight slab (resident)
            pl.BlockSpec((3, C), lambda i: (0, 0)),         # bias slab (resident)
        ],
        out_specs=pl.BlockSpec((bb, C), lambda i: (i, 0)),  # lane-dense output slab
        compiler_params=pltpu.CompilerParams(
            dimension_semantics=("parallel",),
            vmem_limit_bytes=32 * 1024 * 1024,
        ),
    )(x_slab, packed["w"], packed["b"])

    out = out[:B]
    next_state = out[:, :S]
    reward = out[:, S:S + 1]
    uncertainty = out[:, S + 1:S + 2]
    return next_state, reward, uncertainty


# ----------------------------------------------------------------------------- params
def init_params(key, state_dim, action_dim, hidden_dim):
    """Deterministic init mimicking torch.nn.Linear default U(-1/sqrt(fan_in), +)."""
    def linear(k, fan_in, fan_out):
        kw, kb = jax.random.split(k)
        bound = 1.0 / jnp.sqrt(jnp.float32(fan_in))
        w = jax.random.uniform(kw, (fan_in, fan_out), jnp.float32, -bound, bound)
        b = jax.random.uniform(kb, (1, fan_out), jnp.float32, -bound, bound)
        return w, b

    d_in = state_dim + action_dim
    H = hidden_dim
    keys = jax.random.split(key, 8)
    p = {}
    p["tw1"], p["tb1"] = linear(keys[0], d_in, H)
    p["tw2"], p["tb2"] = linear(keys[1], H, H)
    p["tw3"], p["tb3"] = linear(keys[2], H, 2 * state_dim)
    p["rw1"], p["rb1"] = linear(keys[3], d_in, H)
    p["rw2"], p["rb2"] = linear(keys[4], H, H // 2)
    p["rw3"], p["rb3"] = linear(keys[5], H // 2, 1)
    p["uw1"], p["ub1"] = linear(keys[6], d_in, H // 2)
    p["uw2"], p["ub2"] = linear(keys[7], H // 2, 1)
    return p


def pack_params(params, state_dim, action_dim, hidden_dim):
    """Pack the 8 Linear layers into one (3, C, C) weight slab + (3, C) bias slab
    (done once, outside the forward).  Column layout per stage:
      stage 1: [h_t(H) | h_r(H) | h_u(H/2) | 0]
      stage 2: [h2_t(H) | h2_r(H/2) | h_u pass-through(H/2) | 0]
      stage 3: [mean(S) | logvar(S) | reward(1) | unc_logit(1) | 0]
    """
    S, A, H = state_dim, action_dim, hidden_dim
    assert H % 2 == 0, "hidden_dim must be even"
    H2 = H // 2
    d_in = S + A
    C = _slab_width(S, A, H)

    w = jnp.zeros((3, C, C), jnp.float32)
    b = jnp.zeros((3, C), jnp.float32)

    # Stage 1: stacked first layers (shared input [state|action]; eps rows stay zero).
    w = w.at[0, 0:d_in, 0:H].set(params["tw1"])
    w = w.at[0, 0:d_in, H:2 * H].set(params["rw1"])
    w = w.at[0, 0:d_in, 2 * H:2 * H + H2].set(params["uw1"])
    b = b.at[0, 0:H].set(params["tb1"][0])
    b = b.at[0, H:2 * H].set(params["rb1"][0])
    b = b.at[0, 2 * H:2 * H + H2].set(params["ub1"][0])

    # Stage 2: block-diagonal second layers + identity pass-through for h_u.
    w = w.at[1, 0:H, 0:H].set(params["tw2"])
    w = w.at[1, H:2 * H, H:H + H2].set(params["rw2"])
    w = w.at[1, 2 * H:2 * H + H2, H + H2:H + 2 * H2].set(jnp.eye(H2, dtype=jnp.float32))
    b = b.at[1, 0:H].set(params["tb2"][0])
    b = b.at[1, H:H + H2].set(params["rb2"][0])

    # Stage 3: block-diagonal output heads.
    w = w.at[2, 0:H, 0:2 * S].set(params["tw3"])
    w = w.at[2, H:H + H2, 2 * S:2 * S + 1].set(params["rw3"])
    w = w.at[2, H + H2:H + 2 * H2, 2 * S + 1:2 * S + 2].set(params["uw2"])
    b = b.at[2, 0:2 * S].set(params["tb3"][0])
    b = b.at[2, 2 * S:2 * S + 1].set(params["rb3"][0])
    b = b.at[2, 2 * S + 1:2 * S + 2].set(params["ub2"][0])

    return {"w": w, "b": b}


# ----------------------------------------------------------------------------- main
if __name__ == "__main__":
    B, STATE_DIM, ACTION_DIM, HIDDEN_DIM = 8, 8, 4, 32

    key = jax.random.PRNGKey(0)
    k_params, k_state, k_action, k_eps = jax.random.split(key, 4)

    params = init_params(k_params, STATE_DIM, ACTION_DIM, HIDDEN_DIM)
    packed = pack_params(params, STATE_DIM, ACTION_DIM, HIDDEN_DIM)

    state = jax.random.normal(k_state, (B, STATE_DIM), jnp.float32)
    action = jax.random.normal(k_action, (B, ACTION_DIM), jnp.float32)
    # torch.randn_like(next_state_std) equivalent: explicit standard-normal noise.
    eps = jax.random.normal(k_eps, (B, STATE_DIM), jnp.float32)

    next_state, reward, uncertainty = environment_model_forward(
        state, action, packed, eps, hidden_dim=HIDDEN_DIM)
    jax.block_until_ready((next_state, reward, uncertainty))

    assert next_state.shape == (B, STATE_DIM)
    assert reward.shape == (B, 1)
    assert uncertainty.shape == (B, 1)
    assert bool(jnp.all(jnp.isfinite(next_state)))
    assert bool(jnp.all(jnp.isfinite(reward)))
    assert bool(jnp.all((uncertainty >= 0.0) & (uncertainty <= 1.0)))

    # Plain-JAX reference (unfused). Use HIGHEST matmul precision so the comparison
    # isolates kernel error; MXU f32 pass choices can differ slightly from XLA's
    # default bf16-pass dots, so compare with a few-1e-3-level tolerance.
    hp = jax.lax.Precision.HIGHEST
    x = jnp.concatenate([state, action], axis=-1)
    h = jnp.maximum(jnp.dot(x, params["tw1"], precision=hp) + params["tb1"], 0.0)
    h = jnp.maximum(jnp.dot(h, params["tw2"], precision=hp) + params["tb2"], 0.0)
    t = jnp.dot(h, params["tw3"], precision=hp) + params["tb3"]
    ref_next = t[:, :STATE_DIM] + jnp.exp(0.5 * t[:, STATE_DIM:]) * eps
    r = jnp.maximum(jnp.dot(x, params["rw1"], precision=hp) + params["rb1"], 0.0)
    r = jnp.maximum(jnp.dot(r, params["rw2"], precision=hp) + params["rb2"], 0.0)
    ref_reward = jnp.dot(r, params["rw3"], precision=hp) + params["rb3"]
    u = jnp.maximum(jnp.dot(x, params["uw1"], precision=hp) + params["ub1"], 0.0)
    ref_unc = 1.0 / (1.0 + jnp.exp(-(jnp.dot(u, params["uw2"], precision=hp) + params["ub2"])))

    assert bool(jnp.allclose(next_state, ref_next, atol=2e-2, rtol=2e-2)), "next_state mismatch"
    assert bool(jnp.allclose(reward, ref_reward, atol=2e-2, rtol=2e-2)), "reward mismatch"
    assert bool(jnp.allclose(uncertainty, ref_unc, atol=2e-2, rtol=2e-2)), "uncertainty mismatch"

    print("KERNEL_OK")
</pallas_src>

<mosaic_0001>
module attributes {stable_mosaic.version = 11 : i64} {
  func.func @_env_model_kernel(%arg0: i32, %arg1: memref<8x128xf32, #tpu.memory_space<vmem>>, %arg2: memref<3x128x128xf32, #tpu.memory_space<vmem>>, %arg3: memref<3x128xf32, #tpu.memory_space<vmem>>, %arg4: memref<8x128xf32, #tpu.memory_space<vmem>>) attributes {dimension_semantics = [#tpu.dimension_semantics<parallel>], iteration_bounds = array<i64: 1>, scalar_prefetch = 0 : i64, scratch_operands = 0 : i64, tpu.core_type = #tpu.core_type<tc>, window_params = [{transform_indices = @transform_0, window_bounds = array<i64: 8, 128>}, {pipeline_mode = #tpu.pipeline_mode<synchronous>, transform_indices = @transform_1, window_bounds = array<i64: 3, 128, 128>}, {pipeline_mode = #tpu.pipeline_mode<synchronous>, transform_indices = @transform_2, window_bounds = array<i64: 3, 128>}, {transform_indices = @transform_3, window_bounds = array<i64: 8, 128>}]} {
    %c0 = arith.constant 0 : index
    %c0_0 = arith.constant 0 : index
    %0 = vector.load %arg1[%c0, %c0_0] : memref<8x128xf32, #tpu.memory_space<vmem>>, vector<8x128xf32>
    %c0_1 = arith.constant 0 : index
    %c0_2 = arith.constant 0 : index
    %1 = vector.load %arg3[%c0_1, %c0_2] : memref<3x128xf32, #tpu.memory_space<vmem>>, vector<1x128xf32>
    %c1 = arith.constant 1 : index
    %c0_3 = arith.constant 0 : index
    %2 = vector.load %arg3[%c1, %c0_3] : memref<3x128xf32, #tpu.memory_space<vmem>>, vector<1x128xf32>
    %c2 = arith.constant 2 : index
    %c0_4 = arith.constant 0 : index
    %3 = vector.load %arg3[%c2, %c0_4] : memref<3x128xf32, #tpu.memory_space<vmem>>, vector<1x128xf32>
    %c0_5 = arith.constant 0 : index
    %c0_6 = arith.constant 0 : index
    %c0_7 = arith.constant 0 : index
    %4 = vector.load %arg2[%c0_5, %c0_6, %c0_7] : memref<3x128x128xf32, #tpu.memory_space<vmem>>, vector<1x128x128xf32>
    %5 = vector.shape_cast %4 : vector<1x128x128xf32> to vector<128x128xf32>
    %cst = arith.constant dense<0.000000e+00> : vector<8x128xf32>
    %6 = tpu.matmul %0, %5, %cst {dimension_numbers = #tpu.dot_dimension_numbers<[1], [0], [0], [1], [0, 0, 1, 1], [], []>} : vector<8x128xf32>, vector<128x128xf32>, vector<8x128xf32> -> vector<8x128xf32>
    %7 = vector.broadcast %1 : vector<1x128xf32> to vector<8x128xf32>
    %8 = arith.addf %6, %7 : vector<8x128xf32>
    %cst_8 = arith.constant 0.000000e+00 : f32
    %9 = vector.broadcast %cst_8 : f32 to vector<8x128xf32>
    %10 = arith.maximumf %8, %9 : vector<8x128xf32>
    %c1_9 = arith.constant 1 : index
    %c0_10 = arith.constant 0 : index
    %c0_11 = arith.constant 0 : index
    %11 = vector.load %arg2[%c1_9, %c0_10, %c0_11] : memref<3x128x128xf32, #tpu.memory_space<vmem>>, vector<1x128x128xf32>
    %12 = vector.shape_cast %11 : vector<1x128x128xf32> to vector<128x128xf32>
    %cst_12 = arith.constant dense<0.000000e+00> : vector<8x128xf32>
    %13 = tpu.matmul %10, %12, %cst_12 {dimension_numbers = #tpu.dot_dimension_numbers<[1], [0], [0], [1], [0, 0, 1, 1], [], []>} : vector<8x128xf32>, vector<128x128xf32>, vector<8x128xf32> -> vector<8x128xf32>
    %14 = vector.broadcast %2 : vector<1x128xf32> to vector<8x128xf32>
    %15 = arith.addf %13, %14 : vector<8x128xf32>
    %cst_13 = arith.constant 0.000000e+00 : f32
    %16 = vector.broadcast %cst_13 : f32 to vector<8x128xf32>
    %17 = arith.maximumf %15, %16 : vector<8x128xf32>
    %c2_14 = arith.constant 2 : index
    %c0_15 = arith.constant 0 : index
    %c0_16 = arith.constant 0 : index
    %18 = vector.load %arg2[%c2_14, %c0_15, %c0_16] : memref<3x128x128xf32, #tpu.memory_space<vmem>>, vector<1x128x128xf32>
    %19 = vector.shape_cast %18 : vector<1x128x128xf32> to vector<128x128xf32>
    %cst_17 = arith.constant dense<0.000000e+00> : vector<8x128xf32>
    %20 = tpu.matmul %17, %19, %cst_17 {dimension_numbers = #tpu.dot_dimension_numbers<[1], [0], [0], [1], [0, 0, 1, 1], [], []>} : vector<8x128xf32>, vector<128x128xf32>, vector<8x128xf32> -> vector<8x128xf32>
    %21 = vector.broadcast %3 : vector<1x128xf32> to vector<8x128xf32>
    %22 = arith.addf %20, %21 : vector<8x128xf32>
    %23 = vector.extract_strided_slice %22 {offsets = [0, 0], sizes = [8, 8], strides = [1, 1]} : vector<8x128xf32> to vector<8x8xf32>
    %24 = vector.extract_strided_slice %22 {offsets = [0, 8], sizes = [8, 8], strides = [1, 1]} : vector<8x128xf32> to vector<8x8xf32>
    %25 = vector.extract_strided_slice %0 {offsets = [0, 12], sizes = [8, 8], strides = [1, 1]} : vector<8x128xf32> to vector<8x8xf32>
    %cst_18 = arith.constant 5.000000e-01 : f32
    %26 = vector.broadcast %cst_18 : f32 to vector<8x8xf32>
    %27 = arith.mulf %26, %24 : vector<8x8xf32>
    %28 = math.exp %27 : vector<8x8xf32>
    %29 = arith.mulf %28, %25 : vector<8x8xf32>
    %30 = arith.addf %23, %29 : vector<8x8xf32>
    %31 = vector.extract_strided_slice %22 {offsets = [0, 16], sizes = [8, 1], strides = [1, 1]} : vector<8x128xf32> to vector<8x1xf32>
    %32 = vector.extract_strided_slice %22 {offsets = [0, 17], sizes = [8, 1], strides = [1, 1]} : vector<8x128xf32> to vector<8x1xf32>
    %cst_19 = arith.constant 0.000000e+00 : f32
    %33 = vector.broadcast %cst_19 : f32 to vector<8x1xf32>
    %34 = arith.subf %33, %32 : vector<8x1xf32>
    %35 = math.exp %34 : vector<8x1xf32>
    %cst_20 = arith.constant 1.000000e+00 : f32
    %36 = vector.broadcast %cst_20 : f32 to vector<8x1xf32>
    %37 = arith.addf %36, %35 : vector<8x1xf32>
    %cst_21 = arith.constant 1.000000e+00 : f32
    %38 = vector.broadcast %cst_21 : f32 to vector<8x1xf32>
    %39 = arith.divf %38, %37 : vector<8x1xf32>
    %cst_22 = arith.constant 0.000000e+00 : f32
    %40 = vector.broadcast %cst_22 : f32 to vector<8x118xf32>
    %41 = tpu.concatenate %30, %31, %39, %40 in 1 : vector<8x8xf32>, vector<8x1xf32>, vector<8x1xf32>, vector<8x118xf32> -> vector<8x128xf32>
    %c0_23 = arith.constant 0 : index
    %c0_24 = arith.constant 0 : index
    %42 = vector.load %arg4[%c0_23, %c0_24] : memref<8x128xf32, #tpu.memory_space<vmem>>, vector<8x128xf32>
    tpu.vector_store %arg4[%c0_23, %c0_24], %41 {strides = array<i32>} : memref<8x128xf32, #tpu.memory_space<vmem>>, vector<8x128xf32>,
    return
  }
  func.func @transform_0(%arg0: i32) -> (i32, i32) {
    %c0_i32 = arith.constant 0 : i32
    %c0_i32_0 = arith.constant 0 : i32
    return %arg0, %c0_i32 : i32, i32
  }
  func.func @transform_1(%arg0: i32) -> (i32, i32, i32) {
    %c0_i32 = arith.constant 0 : i32
    %c0_i32_0 = arith.constant 0 : i32
    %c0_i32_1 = arith.constant 0 : i32
    %c0_i32_2 = arith.constant 0 : i32
    return %c0_i32, %c0_i32_0, %c0_i32_1 : i32, i32, i32
  }
  func.func @transform_2(%arg0: i32) -> (i32, i32) {
    %c0_i32 = arith.constant 0 : i32
    %c0_i32_0 = arith.constant 0 : i32
    %c0_i32_1 = arith.constant 0 : i32
    return %c0_i32, %c0_i32_0 : i32, i32
  }
  func.func @transform_3(%arg0: i32) -> (i32, i32) {
    %c0_i32 = arith.constant 0 : i32
    %c0_i32_0 = arith.constant 0 : i32
    return %arg0, %c0_i32 : i32, i32
  }
}

</mosaic_0001>

<llo_original>
// kernel: tpu_custom_call.1
$region0: #{tpu_custom_call.1}
  #allocation0 [shape = 'u32[]', space=smem, size = 0x4, offset = 0x4, fixed_abs, tag = 'smem constant byte address 0x4 - core index']
  #allocation1 [shape = 'u32[144,128]{1,0:T(1,128)}', space=vmem, size = 0x12000, scoped, tag = 'internal scratch']
  %s0 = inlined_call_operand.hbm [shape: f32[8,128], index: 0, kind: input, shape index: {}]
  %s1 = inlined_call_operand.hbm [shape: f32[3,128,128], index: 1, kind: input, shape index: {}]
  %s2 = inlined_call_operand.vmem [shape: f32[3,128], index: 2, kind: input, shape index: {}]
  %s3 = inlined_call_operand.hbm [shape: f32[8,128], index: 3, kind: output, shape index: {}]
  %s4 = sld [smem:[#allocation0]]
  $region30: #{tpu_custom_call.1} parent=0
    _
  %s6 = ssub.s32 1, %s4
  %s7 = scalar_select 0, %s6, %s4
  $region1: #{tpu_custom_call.1} parent=0
    #allocation2 [shape = 'u8[4096]{0}', space=vmem, size = 0x1000, scoped, tag = 'input window, operand 0, single buffered']
    #allocation3 [shape = 's32[1]{0}', space=sflag, size = 0x4, scoped, tag = 'scoped memory for tpu_custom_call.1']
    #allocation4 [shape = 's32[1]{0}', space=sflag, size = 0x4, scoped, tag = 'scoped memory for tpu_custom_call.1']
    #allocation5 [shape = 'u8[196608]{0}', space=vmem, size = 0x30000, scoped, tag = 'input window, operand 1, single buffered']
    #allocation6 [shape = 's32[1]{0}', space=sflag, size = 0x4, scoped, tag = 'scoped memory for tpu_custom_call.1']
    #allocation7 [shape = 'u8[4096]{0}', space=vmem, size = 0x1000, scoped, tag = 'output window, operand 0, single buffered']
    %8 = vsyncpa [#allocation3], 0
    %9 = vsyncpa [#allocation6], 0
    %10 = vsyncpa [#allocation4], 0
    // Predicated region
    $region2: #{tpu_custom_call.1} parent=1 // pred_check
      _
    $region3: #{tpu_custom_call.1} parent=1 // pred_check_branch
      %12 = sbr.rel (0) target = $region5
    $region4: #{tpu_custom_call.1} parent=1 // pred_region
      %s14 = ssub.s32 128, 128
      %15 = vsyncadd [#allocation3], %s14
      %s17 = sshll.u32 [#allocation2], 4
      %s18 = int_to_ptr.vmem [resolvable:$true] %s17
      %20 = dma.hbm_to_vmem [thread:$0]  %s0, 128, %s18, [#allocation3]
    $region5: #{tpu_custom_call.1} parent=1 // pred_fallthru
      _
    // Predicated region
    $region6: #{tpu_custom_call.1} parent=1 // pred_check
      _
    $region7: #{tpu_custom_call.1} parent=1 // pred_check_branch
      %22 = sbr.rel (0) target = $region9
    $region8: #{tpu_custom_call.1} parent=1 // pred_region
      %s24 = ssub.s32 6144, 6144
      %25 = vsyncadd [#allocation6], %s24
      %s26 = sshll.u32 [#allocation5], 4
      %s27 = int_to_ptr.vmem [resolvable:$true] %s26
      %32 = dma.hbm_to_vmem [thread:$0]  %s1, 6144, %s27, [#allocation6], 128, 128, 8
    $region9: #{tpu_custom_call.1} parent=1 // pred_fallthru
      _
    // Predicated region
    $region10: #{tpu_custom_call.1} parent=1 // pred_check
      _
    $region11: #{tpu_custom_call.1} parent=1 // pred_check_branch
      %34 = sbr.rel (0) target = $region13
    $region12: #{tpu_custom_call.1} parent=1 // pred_region
      _
    $region13: #{tpu_custom_call.1} parent=1 // pred_fallthru
      _
    // Predicated region
    $region14: #{tpu_custom_call.1} parent=1 // pred_check
      _
    $region15: #{tpu_custom_call.1} parent=1 // pred_check_branch
      %36 = sbr.rel (0) target = $region17
    $region16: #{tpu_custom_call.1} parent=1 // pred_region
      %37 = dma.done [#allocation3], 128
    $region17: #{tpu_custom_call.1} parent=1 // pred_fallthru
      _
    // Predicated region
    $region18: #{tpu_custom_call.1} parent=1 // pred_check
      _
    $region19: #{tpu_custom_call.1} parent=1 // pred_check_branch
      %39 = sbr.rel (0) target = $region21
    $region20: #{tpu_custom_call.1} parent=1 // pred_region
      %40 = dma.done [#allocation6], 6144
    $region21: #{tpu_custom_call.1} parent=1 // pred_fallthru
      _
    %v41 = vld [vmem:[#allocation2] sm:$0xff]
    %v42 = vld [vmem:[%s2] sm:$0x1]
    %v43 = vld [vmem:[%s2 + $0x1] sm:$0x1]
    %v44 = vld [vmem:[%s2 + $0x2] sm:$0x1]
    %v45 = vld [vmem:[#allocation5] sm:$0xff]
    %v46 = vld [vmem:[#allocation5 + $0x8] sm:$0xff]
    %v47 = vld [vmem:[#allocation5 + $0x10] sm:$0xff]
    %v48 = vld [vmem:[#allocation5 + $0x18] sm:$0xff]
    %v49 = vld [vmem:[#allocation5 + $0x20] sm:$0xff]
    %v50 = vld [vmem:[#allocation5 + $0x28] sm:$0xff]
    %v51 = vld [vmem:[#allocation5 + $0x30] sm:$0xff]
    %v52 = vld [vmem:[#allocation5 + $0x38] sm:$0xff]
    %v53 = vld [vmem:[#allocation5 + $0x40] sm:$0xff]
    %v54 = vld [vmem:[#allocation5 + $0x48] sm:$0xff]
    %v55 = vld [vmem:[#allocation5 + $0x50] sm:$0xff]
    %v56 = vld [vmem:[#allocation5 + $0x58] sm:$0xff]
    %v57 = vld [vmem:[#allocation5 + $0x60] sm:$0xff]
    %v58 = vld [vmem:[#allocation5 + $0x68] sm:$0xff]
    %v59 = vld [vmem:[#allocation5 + $0x70] sm:$0xff]
    %v60 = vld [vmem:[#allocation5 + $0x78] sm:$0xff]
    %v61 = vlaneseq
    %v62 = vshrl.u32 %v61, 7
    %v63 = vsub.s32 0, %v62
    %v64 = vrot.slane %v42, %v63
    %65 = vmatprep.subr.mxu0 0.0
    %66 = vmatpush1.msra.mxu0 %v45
    %67 = vmatprep.subr.mxu0 0.0
    %68 = vmatpush1.msra.mxu0 %v46
    %69 = vmatprep.subr.mxu0 0.0
    %70 = vmatpush1.msra.mxu0 %v47
    %71 = vmatprep.subr.mxu0 0.0
    %72 = vmatpush1.msra.mxu0 %v48
    %73 = vmatprep.subr.mxu0 0.0
    %74 = vmatpush1.msra.mxu0 %v49
    %75 = vmatprep.subr.mxu0 0.0
    %76 = vmatpush1.msra.mxu0 %v50
    %77 = vmatprep.subr.mxu0 0.0
    %78 = vmatpush1.msra.mxu0 %v51
    %79 = vmatprep.subr.mxu0 0.0
    %80 = vmatpush1.msra.mxu0 %v52
    %81 = vmatprep.subr.mxu0 0.0
    %82 = vmatpush1.msra.mxu0 %v53
    %83 = vmatprep.subr.mxu0 0.0
    %84 = vmatpush1.msra.mxu0 %v54
    %85 = vmatprep.subr.mxu0 0.0
    %86 = vmatpush1.msra.mxu0 %v55
    %87 = vmatprep.subr.mxu0 0.0
    %88 = vmatpush1.msra.mxu0 %v56
    %89 = vmatprep.subr.mxu0 0.0
    %90 = vmatpush1.msra.mxu0 %v57
    %91 = vmatprep.subr.mxu0 0.0
    %92 = vmatpush1.msra.mxu0 %v58
    %93 = vmatprep.subr.mxu0 0.0
    %94 = vmatpush1.msra.mxu0 %v59
    %95 = vmatprep.subr.mxu0 0.0
    %96 = vmatpush1.msra.mxu0 %v60
    %97 = vmatprep.subr.mxu0 0.0
    %98 = vmatpush1.msra.mxu0 0.0
    %99 = vmatprep.subr.mxu0 0.0
    %100 = vmatpush1.msra.mxu0 0.0
    %101 = vmatprep.subr.mxu0 0.0
    %102 = vmatpush1.msra.mxu0 0.0
    %103 = vmatprep.subr.mxu0 0.0
    %104 = vmatpush1.msra.mxu0 0.0
    %105 = vmatprep.subr.mxu0 0.0
    %106 = vmatpush1.msra.mxu0 0.0
    %107 = vmatprep.subr.mxu0 0.0
    %108 = vmatpush1.msra.mxu0 0.0
    %109 = vmatprep.subr.mxu0 0.0
    %110 = vmatpush1.msra.mxu0 0.0
    %111 = vmatprep.subr.mxu0 0.0
    %112 = vmatpush1.msra.mxu0 0.0
    %113 = vmatprep.subr.mxu0 0.0
    %114 = vmatpush1.msra.mxu0 0.0
    %115 = vmatprep.subr.mxu0 0.0
    %116 = vmatpush1.msra.mxu0 0.0
    %117 = vmatprep.subr.mxu0 0.0
    %118 = vmatpush1.msra.mxu0 0.0
    %119 = vmatprep.subr.mxu0 0.0
    %120 = vmatpush1.msra.mxu0 0.0
    %121 = vmatprep.subr.mxu0 0.0
    %122 = vmatpush1.msra.mxu0 0.0
    %123 = vmatprep.subr.mxu0 0.0
    %124 = vmatpush1.msra.mxu0 0.0
    %125 = vmatprep.subr.mxu0 0.0
    %126 = vmatpush1.msra.mxu0 0.0
    %127 = vmatprep.subr.mxu0 0.0
    %128 = vmatpush1.msra.mxu0 0.0
    %129 = vmatprep.mubr.f32.mxu0 0.0
    %130 = vmatmul.mubr.f32.gmra.mrb[0].mxu0 %v41
    %v131 = vpop.f32.mrb[0].mxu0
    %v132 = vadd.f32 %v64, %v131
    %v133 = vpop.f32.mrb[0].mxu0
    %134 = vdwg.mxu0
    %v135 = vmax.f32 %v132, 0.0
    %s136 = scalar_lea.vmem [#allocation5], 128
    %v137 = vld [vmem:[%s136] sm:$0xff]
    %v138 = vld [vmem:[%s136 + $0x8] sm:$0xff]
    %v139 = vld [vmem:[%s136 + $0x10] sm:$0xff]
    %v140 = vld [vmem:[%s136 + $0x18] sm:$0xff]
    %v141 = vld [vmem:[%s136 + $0x20] sm:$0xff]
    %v142 = vld [vmem:[%s136 + $0x28] sm:$0xff]
    %v143 = vld [vmem:[%s136 + $0x30] sm:$0xff]
    %v144 = vld [vmem:[%s136 + $0x38] sm:$0xff]
    %v145 = vld [vmem:[%s136 + $0x40] sm:$0xff]
    %v146 = vld [vmem:[%s136 + $0x48] sm:$0xff]
    %v147 = vld [vmem:[%s136 + $0x50] sm:$0xff]
    %v148 = vld [vmem:[%s136 + $0x58] sm:$0xff]
    %v149 = vld [vmem:[%s136 + $0x60] sm:$0xff]
    %v150 = vld [vmem:[%s136 + $0x68] sm:$0xff]
    %v151 = vld [vmem:[%s136 + $0x70] sm:$0xff]
    %v152 = vld [vmem:[%s136 + $0x78] sm:$0xff]
    %v153 = vlaneseq
    %v154 = vshrl.u32 %v153, 7
    %v155 = vsub.s32 0, %v154
    %v156 = vrot.slane %v43, %v155
    %157 = vmatprep.subr.mxu0 0.0
    %158 = vmatpush1.msra.mxu0 %v137
    %159 = vmatprep.subr.mxu0 0.0
    %160 = vmatpush1.msra.mxu0 %v138
    %161 = vmatprep.subr.mxu0 0.0
    %162 = vmatpush1.msra.mxu0 %v139
    %163 = vmatprep.subr.mxu0 0.0
    %164 = vmatpush1.msra.mxu0 %v140
    %165 = vmatprep.subr.mxu0 0.0
    %166 = vmatpush1.msra.mxu0 %v141
    %167 = vmatprep.subr.mxu0 0.0
    %168 = vmatpush1.msra.mxu0 %v142
    %169 = vmatprep.subr.mxu0 0.0
    %170 = vmatpush1.msra.mxu0 %v143
    %171 = vmatprep.subr.mxu0 0.0
    %172 = vmatpush1.msra.mxu0 %v144
    %173 = vmatprep.subr.mxu0 0.0
    %174 = vmatpush1.msra.mxu0 %v145
    %175 = vmatprep.subr.mxu0 0.0
    %176 = vmatpush1.msra.mxu0 %v146
    %177 = vmatprep.subr.mxu0 0.0
    %178 = vmatpush1.msra.mxu0 %v147
    %179 = vmatprep.subr.mxu0 0.0
    %180 = vmatpush1.msra.mxu0 %v148
    %181 = vmatprep.subr.mxu0 0.0
    %182 = vmatpush1.msra.mxu0 %v149
    %183 = vmatprep.subr.mxu0 0.0
    %184 = vmatpush1.msra.mxu0 %v150
    %185 = vmatprep.subr.mxu0 0.0
    %186 = vmatpush1.msra.mxu0 %v151
    %187 = vmatprep.subr.mxu0 0.0
    %188 = vmatpush1.msra.mxu0 %v152
    %189 = vmatprep.subr.mxu0 0.0
    %190 = vmatpush1.msra.mxu0 0.0
    %191 = vmatprep.subr.mxu0 0.0
    %192 = vmatpush1.msra.mxu0 0.0
    %193 = vmatprep.subr.mxu0 0.0
    %194 = vmatpush1.msra.mxu0 0.0
    %195 = vmatprep.subr.mxu0 0.0
    %196 = vmatpush1.msra.mxu0 0.0
    %197 = vmatprep.subr.mxu0 0.0
    %198 = vmatpush1.msra.mxu0 0.0
    %199 = vmatprep.subr.mxu0 0.0
    %200 = vmatpush1.msra.mxu0 0.0
    %201 = vmatprep.subr.mxu0 0.0
    %202 = vmatpush1.msra.mxu0 0.0
    %203 = vmatprep.subr.mxu0 0.0
    %204 = vmatpush1.msra.mxu0 0.0
    %205 = vmatprep.subr.mxu0 0.0
    %206 = vmatpush1.msra.mxu0 0.0
    %207 = vmatprep.subr.mxu0 0.0
    %208 = vmatpush1.msra.mxu0 0.0
    %209 = vmatprep.subr.mxu0 0.0
    %210 = vmatpush1.msra.mxu0 0.0
    %211 = vmatprep.subr.mxu0 0.0
    %212 = vmatpush1.msra.mxu0 0.0
    %213 = vmatprep.subr.mxu0 0.0
    %214 = vmatpush1.msra.mxu0 0.0
    %215 = vmatprep.subr.mxu0 0.0
    %216 = vmatpush1.msra.mxu0 0.0
    %217 = vmatprep.subr.mxu0 0.0
    %218 = vmatpush1.msra.mxu0 0.0
    %219 = vmatprep.subr.mxu0 0.0
    %220 = vmatpush1.msra.mxu0 0.0
    %221 = vmatprep.mubr.f32.mxu0 0.0
    %222 = vmatmul.mubr.f32.gmra.mrb[0].mxu0 %v135
    %v223 = vpop.f32.mrb[0].mxu0
    %v224 = vadd.f32 %v156, %v223
    %v225 = vpop.f32.mrb[0].mxu0
    %226 = vdwg.mxu0
    %v227 = vmax.f32 %v224, 0.0
    %s228 = scalar_lea.vmem [#allocation5], 256
    %v229 = vld [vmem:[%s228] sm:$0xff]
    %v230 = vld [vmem:[%s228 + $0x8] sm:$0xff]
    %v231 = vld [vmem:[%s228 + $0x10] sm:$0xff]
    %v232 = vld [vmem:[%s228 + $0x18] sm:$0xff]
    %v233 = vld [vmem:[%s228 + $0x20] sm:$0xff]
    %v234 = vld [vmem:[%s228 + $0x28] sm:$0xff]
    %v235 = vld [vmem:[%s228 + $0x30] sm:$0xff]
    %v236 = vld [vmem:[%s228 + $0x38] sm:$0xff]
    %v237 = vld [vmem:[%s228 + $0x40] sm:$0xff]
    %v238 = vld [vmem:[%s228 + $0x48] sm:$0xff]
    %v239 = vld [vmem:[%s228 + $0x50] sm:$0xff]
    %v240 = vld [vmem:[%s228 + $0x58] sm:$0xff]
    %v241 = vld [vmem:[%s228 + $0x60] sm:$0xff]
    %v242 = vld [vmem:[%s228 + $0x68] sm:$0xff]
    %v243 = vld [vmem:[%s228 + $0x70] sm:$0xff]
    %v244 = vld [vmem:[%s228 + $0x78] sm:$0xff]
    %v245 = vlaneseq
    %v246 = vshrl.u32 %v245, 7
    %v247 = vsub.s32 0, %v246
    %v248 = vrot.slane %v44, %v247
    %249 = vmatprep.subr.mxu0 0.0
    %250 = vmatpush1.msra.mxu0 %v229
    %251 = vmatprep.subr.mxu0 0.0
    %252 = vmatpush1.msra.mxu0 %v230
    %253 = vmatprep.subr.mxu0 0.0
    %254 = vmatpush1.msra.mxu0 %v231
    %255 = vmatprep.subr.mxu0 0.0
    %256 = vmatpush1.msra.mxu0 %v232
    %257 = vmatprep.subr.mxu0 0.0
    %258 = vmatpush1.msra.mxu0 %v233
    %259 = vmatprep.subr.mxu0 0.0
    %260 = vmatpush1.msra.mxu0 %v234
    %261 = vmatprep.subr.mxu0 0.0
    %262 = vmatpush1.msra.mxu0 %v235
    %263 = vmatprep.subr.mxu0 0.0
    %264 = vmatpush1.msra.mxu0 %v236
    %265 = vmatprep.subr.mxu0 0.0
    %266 = vmatpush1.msra.mxu0 %v237
    %267 = vmatprep.subr.mxu0 0.0
    %268 = vmatpush1.msra.mxu0 %v238
    %269 = vmatprep.subr.mxu0 0.0
    %270 = vmatpush1.msra.mxu0 %v239
    %271 = vmatprep.subr.mxu0 0.0
    %272 = vmatpush1.msra.mxu0 %v240
    %273 = vmatprep.subr.mxu0 0.0
    %274 = vmatpush1.msra.mxu0 %v241
    %275 = vmatprep.subr.mxu0 0.0
    %276 = vmatpush1.msra.mxu0 %v242
    %277 = vmatprep.subr.mxu0 0.0
    %278 = vmatpush1.msra.mxu0 %v243
    %279 = vmatprep.subr.mxu0 0.0
    %280 = vmatpush1.msra.mxu0 %v244
    %281 = vmatprep.subr.mxu0 0.0
    %282 = vmatpush1.msra.mxu0 0.0
    %283 = vmatprep.subr.mxu0 0.0
    %284 = vmatpush1.msra.mxu0 0.0
    %285 = vmatprep.subr.mxu0 0.0
    %286 = vmatpush1.msra.mxu0 0.0
    %287 = vmatprep.subr.mxu0 0.0
    %288 = vmatpush1.msra.mxu0 0.0
    %289 = vmatprep.subr.mxu0 0.0
    %290 = vmatpush1.msra.mxu0 0.0
    %291 = vmatprep.subr.mxu0 0.0
    %292 = vmatpush1.msra.mxu0 0.0
    %293 = vmatprep.subr.mxu0 0.0
    %294 = vmatpush1.msra.mxu0 0.0
    %295 = vmatprep.subr.mxu0 0.0
    %296 = vmatpush1.msra.mxu0 0.0
    %297 = vmatprep.subr.mxu0 0.0
    %298 = vmatpush1.msra.mxu0 0.0
    %299 = vmatprep.subr.mxu0 0.0
    %300 = vmatpush1.msra.mxu0 0.0
    %301 = vmatprep.subr.mxu0 0.0
    %302 = vmatpush1.msra.mxu0 0.0
    %303 = vmatprep.subr.mxu0 0.0
    %304 = vmatpush1.msra.mxu0 0.0
    %305 = vmatprep.subr.mxu0 0.0
    %306 = vmatpush1.msra.mxu0 0.0
    %307 = vmatprep.subr.mxu0 0.0
    %308 = vmatpush1.msra.mxu0 0.0
    %309 = vmatprep.subr.mxu0 0.0
    %310 = vmatpush1.msra.mxu0 0.0
    %311 = vmatprep.subr.mxu0 0.0
    %312 = vmatpush1.msra.mxu0 0.0
    %313 = vmatprep.mubr.f32.mxu0 0.0
    %314 = vmatmul.mubr.f32.gmra.mrb[0].mxu0 %v227
    %v315 = vpop.f32.mrb[0].mxu0
    %v316 = vadd.f32 %v248, %v315
    %v317 = vpop.f32.mrb[0].mxu0
    %318 = vdwg.mxu0
    %v319 = vmul.f32 %v316, 0.5
    %v320 = vmul.f32 %v319, 1.442695
    %v321 = vpow.pop %v320
    %323 = vrot.lane.b32.xlu0 %v41, 124
    %v324 = vpop.permute.xlu0 %323
    %v326 = vmul.f32 %v321, %v324
    %328 = vrot.lane.b32.xlu0 %v326, 120
    %v329 = vpop.permute.xlu0 %328
    %v331 = vadd.f32 %v316, %v329
    %v332 = vsub.f32 0.0, %v316
    %v333 = vmul.f32 %v332, 1.442695
    %v334 = vpow.pop %v333
    %v335 = vadd.f32 %v334, 1.0
    %v336 = vrcp.pop %v335
    %v337 = vmul.f32 1.0, %v336
    %339 = vrot.lane.b32.xlu0 %v316, 120
    %v340 = vpop.permute.xlu0 %339
    %343 = vrot.lane.b32.xlu0 %v337, 120
    %v344 = vpop.permute.xlu0 %343
    %vm346 = vcmask 64512
    %v347 = vsel %vm346, %v331, %v340
    %vm348 = vcmask 72704
    %v349 = vsel %vm348, %v347, %v344
    %vm350 = vcmask 80896
    %v351 = vsel %vm350, %v349, 0.0
    %352 = vst [vmem:[#allocation7] sm:$0xff] %v351
    // Predicated region
    $region22: #{tpu_custom_call.1} parent=1 // pred_check
      _
    $region23: #{tpu_custom_call.1} parent=1 // pred_check_branch
      %354 = sbr.rel (0) target = $region25
    $region24: #{tpu_custom_call.1} parent=1 // pred_region
      %s356 = ssub.s32 128, 128
      %357 = vsyncadd [#allocation4], %s356
      %s359 = sshll.u32 [#allocation7], 4
      %s360 = int_to_ptr.vmem [resolvable:$true] %s359
      %362 = dma.vmem_to_hbm [thread:$0]  %s360, 128, %s3, [#allocation4]
    $region25: #{tpu_custom_call.1} parent=1 // pred_fallthru
      _
    // Predicated region
    $region26: #{tpu_custom_call.1} parent=1 // pred_check
      _
    $region27: #{tpu_custom_call.1} parent=1 // pred_check_branch
      %364 = sbr.rel (0) target = $region29
    $region28: #{tpu_custom_call.1} parent=1 // pred_region
      %365 = dma.done [#allocation4], 128
    $region29: #{tpu_custom_call.1} parent=1 // pred_fallthru
      _
    %366 = vsyncpa [#allocation3], 1
    %367 = vsyncpa [#allocation6], 1
    %368 = vsyncpa [#allocation4], 1

</llo_original>
